<compile_context>
chip_gen: v7x
topology: tpu7x:2x2x1
jax: 0.10.0
libtpu: 0.0.40
codegen_flags: <defaults>
</compile_context>

<pallas_src>
import math
import numpy as np
import jax
import jax.numpy as jnp
from jax.experimental import pallas as pl
from jax.experimental.pallas import tpu as pltpu

_ROW_TILE = 1024                    # packed-row tile (multiple of 8/16 sublanes)
_VMEM_LIMIT = 48 * 1024 * 1024      # leave headroom under v7x 64 MiB physical VMEM


def _round_up(a, m):
    return (a + m - 1) // m * m


def _pack_rows(x2d, pack):
    """(M, C) -> (ceil(M/pack), pack*C).  Row-major, so when M % pack == 0 this
    is a free view; otherwise zero rows are appended (sliced off afterwards)."""
    M, C = x2d.shape
    Mp = _round_up(M, pack)
    if Mp != M:
        x2d = jnp.pad(x2d, ((0, Mp - M), (0, 0)))
    return x2d.reshape(Mp // pack, pack * C)


def _row_tile(rows):
    return rows if rows <= _ROW_TILE else _ROW_TILE


def _compiler_params():
    return pltpu.CompilerParams(dimension_semantics=("parallel",),
                                vmem_limit_bytes=_VMEM_LIMIT)


# ---------------------------------------------------------------------------
# Kernels
# ---------------------------------------------------------------------------
def _matmul_kernel(x_ref, w_ref, o_ref):
    # x: (TM, K) bf16, w: (K, E) bf16  ->  o: (TM, E) bf16 (f32 accumulation)
    o_ref[...] = jnp.dot(x_ref[...], w_ref[...],
                         preferred_element_type=jnp.float32).astype(o_ref.dtype)


def _proj_residual_kernel(a_ref, l_ref, id_ref, w_ref, b_ref, o_ref):
    # o = identity + (attn_out + local_branch) @ Wp + b     (lane-packed blocks)
    s = (a_ref[...] + l_ref[...]).astype(jnp.bfloat16)
    y = jnp.dot(s, w_ref[...], preferred_element_type=jnp.float32)
    o_ref[...] = (y + b_ref[...] + id_ref[...]).astype(o_ref.dtype)


# ---------------------------------------------------------------------------
# Module
# ---------------------------------------------------------------------------
class AttentionPallas:
    """Pallas TPU port of the PyTorch `Attention` module (sr_ratio == 1 path).

    attn_drop / proj_drop / DropPath are identity at the default p = 0.0."""

    def __init__(self, dim, num_heads=8, qkv_bias=False, qk_scale=None,
                 sr_ratio=1, key=jax.random.PRNGKey(0)):
        assert dim % num_heads == 0
        if sr_ratio != 1:
            # TODO(synk): sr_ratio > 1 spatial-reduction branch (sr1/sr2 convs,
            # LayerNorm+GELU, kv1/kv2, split-head attention) not implemented.
            raise NotImplementedError("only the default sr_ratio == 1 path is implemented")
        assert not qkv_bias  # TODO(synk): qkv_bias=True not wired into the fused kernel

        self.dim = dim
        self.num_heads = num_heads
        head_dim = dim // num_heads
        self.scale = qk_scale or head_dim ** (-0.5)

        k1, k2, k3, k4 = jax.random.split(key, 4)

        def trunc_normal(k, shape, std=0.02):
            return std * jax.random.truncated_normal(k, -2.0, 2.0, shape, jnp.float32)

        # torch nn.Linear weights are (out_features, in_features)
        self.wq = trunc_normal(k1, (dim, dim))
        self.wkv = trunc_normal(k2, (2 * dim, dim))
        self.wproj = trunc_normal(k3, (dim, dim))
        self.bproj = jnp.zeros((dim,), jnp.float32)
        # depthwise local conv: weight (dim, 1, 3, 3); fan_out = 3*3*dim/groups = 9
        self.w_lc = math.sqrt(2.0 / 9.0) * jax.random.normal(k4, (dim, 1, 3, 3), jnp.float32)
        self.b_lc = jnp.zeros((dim,), jnp.float32)

        # ---- Pallas-side packed / padded parameter layouts -------------------
        C = dim
        # Pack `pack` consecutive tokens into one 128-lane row so the matmul
        # kernels load/store full 128-wide vregs even though C (=32) < 128.
        self.pack = max(1, 128 // C)
        e_qkv = 3 * C
        self.e_pad = _round_up(e_qkv, 128)                      # lane-dense q|k|v width
        w_qkv = jnp.concatenate([self.wq.T, self.wkv.T], axis=1)        # (C, 3C)
        w_qkv = jnp.pad(w_qkv, ((0, 0), (0, self.e_pad - e_qkv)))       # (C, e_pad)
        eye = jnp.eye(self.pack, dtype=jnp.float32)
        # Block-diagonal weights act on packed rows: a few extra (tiny) MXU
        # flops buy unmasked 128-lane vector loads/stores on mem-bound GEMMs.
        self.w_qkv_blk = jnp.kron(eye, w_qkv).astype(jnp.bfloat16)      # (pack*C, pack*e_pad)
        self.w_proj_blk = jnp.kron(eye, self.wproj.T).astype(jnp.bfloat16)  # (pack*C, pack*C)
        self.b_proj_pack = jnp.tile(self.bproj, self.pack)[None, :]     # (1, pack*C) f32
        self.w_lc9 = self.w_lc.reshape(C, 9).T.reshape(9, 1, 1, C)      # (9,1,1,C) f32
        self.b_lc3 = self.b_lc.reshape(1, 1, C)                         # (1,1,C)  f32

    # ---- kernel 1: fused q/k/v projection ---------------------------------
    def _packed_matmul(self, x2d, w_blk):
        M, _ = x2d.shape
        xp = _pack_rows(x2d.astype(jnp.bfloat16), self.pack)
        Mr, Kp = xp.shape
        Ep = w_blk.shape[1]
        TM = _row_tile(Mr)
        out = pl.pallas_call(
            _matmul_kernel,
            out_shape=jax.ShapeDtypeStruct((Mr, Ep), jnp.bfloat16),
            grid=(pl.cdiv(Mr, TM),),
            in_specs=[pl.BlockSpec((TM, Kp), lambda i: (i, 0)),
                      pl.BlockSpec((Kp, Ep), lambda i: (0, 0))],
            out_specs=pl.BlockSpec((TM, Ep), lambda i: (i, 0)),
            compiler_params=_compiler_params(),
        )(xp, w_blk)
        return out.reshape(Mr * self.pack, Ep // self.pack)[:M]

    # ---- kernel 2: multi-head softmax attention ----------------------------
    def _attention(self, q, k, v, n_valid):
        # q, k, v: (B, heads, Np, hd) bf16; softmax in f32.
        B, Hh, Np, hd = q.shape
        scale = self.scale

        def kernel(q_ref, k_ref, v_ref, o_ref):
            s = jnp.einsum('hqd,hkd->hqk', q_ref[...], k_ref[...],
                           preferred_element_type=jnp.float32) * scale
            if Np != n_valid:   # mask zero-padded key rows (static branch)
                col = jax.lax.broadcasted_iota(jnp.int32, s.shape, 2)
                s = jnp.where(col < n_valid, s, -1e30)
            m = jnp.max(s, axis=-1, keepdims=True)
            p = jnp.exp(s - m)
            p = p / jnp.sum(p, axis=-1, keepdims=True)
            o = jnp.einsum('hqk,hkd->hqd', p.astype(v_ref.dtype), v_ref[...],
                           preferred_element_type=jnp.float32)
            o_ref[...] = o.astype(o_ref.dtype)

        spec = pl.BlockSpec((None, Hh, Np, hd), lambda b: (b, 0, 0, 0))
        return pl.pallas_call(
            kernel,
            out_shape=jax.ShapeDtypeStruct((B, Hh, Np, hd), jnp.float32),
            grid=(B,),
            in_specs=[spec, spec, spec],
            out_specs=spec,
            compiler_params=_compiler_params(),
        )(q, k, v)

    # ---- kernel 3: depthwise 3x3 local conv (NHWC, channels on lanes) ------
    def _dwconv3x3(self, v_sp_pad, H, W):
        B = v_sp_pad.shape[0]
        C = v_sp_pad.shape[-1]

        def kernel(x_ref, w_ref, b_ref, o_ref):
            x = x_ref[...].astype(jnp.float32)                    # (H+2, W+2, C)
            acc = jnp.broadcast_to(b_ref[...], (H, W, C)).astype(jnp.float32)
            for di in range(3):
                for dj in range(3):
                    acc = acc + x[di:di + H, dj:dj + W, :] * w_ref[di * 3 + dj]
            o_ref[...] = acc.astype(o_ref.dtype)

        return pl.pallas_call(
            kernel,
            out_shape=jax.ShapeDtypeStruct((B, H, W, C), jnp.float32),
            grid=(B,),
            in_specs=[pl.BlockSpec((None, H + 2, W + 2, C), lambda b: (b, 0, 0, 0)),
                      pl.BlockSpec((9, 1, 1, C), lambda b: (0, 0, 0, 0)),
                      pl.BlockSpec((1, 1, C), lambda b: (0, 0, 0))],
            out_specs=pl.BlockSpec((None, H, W, C), lambda b: (b, 0, 0, 0)),
            compiler_params=_compiler_params(),
        )(v_sp_pad, self.w_lc9, self.b_lc3)

    # ---- kernel 4: fused proj + bias + branch-add + residual ---------------
    def _proj_residual(self, attn2d, local2d, id2d):
        M, C = attn2d.shape
        pack = self.pack
        ap = _pack_rows(attn2d.astype(jnp.float32), pack)
        lp = _pack_rows(local2d.astype(jnp.float32), pack)
        ip = _pack_rows(id2d.astype(jnp.float32), pack)
        Mr, CP = ap.shape
        TM = _row_tile(Mr)
        row_spec = pl.BlockSpec((TM, CP), lambda i: (i, 0))
        out = pl.pallas_call(
            _proj_residual_kernel,
            out_shape=jax.ShapeDtypeStruct((Mr, CP), jnp.float32),
            grid=(pl.cdiv(Mr, TM),),
            in_specs=[row_spec, row_spec, row_spec,
                      pl.BlockSpec((CP, CP), lambda i: (0, 0)),
                      pl.BlockSpec((1, CP), lambda i: (0, 0))],
            out_specs=row_spec,
            compiler_params=_compiler_params(),
        )(ap, lp, ip, self.w_proj_blk, self.b_proj_pack)
        return out.reshape(Mr * pack, C)[:M]

    # ---- forward ------------------------------------------------------------
    def __call__(self, x, H, W, identity=None, msg_tokens=None):
        B, Nx, C = x.shape
        assert C == self.dim and Nx == H * W
        msg_n = msg_tokens.shape[1]
        N = Nx + msg_n
        M = B * N
        heads, hd = self.num_heads, C // self.num_heads

        x_q = jnp.concatenate([x, msg_tokens], axis=1)            # (B, N, C) f32
        xq2 = x_q.reshape(M, C)

        # fused q / k / v projection (Pallas kernel 1)
        qkv = self._packed_matmul(xq2, self.w_qkv_blk)            # (M, e_pad) bf16
        q2, k2, v2 = qkv[:, :C], qkv[:, C:2 * C], qkv[:, 2 * C:3 * C]

        def to_bhnd(t):
            return t.reshape(B, N, heads, hd).transpose(0, 2, 1, 3)

        qh, kh, vh = to_bhnd(q2), to_bhnd(k2), to_bhnd(v2)
        Np = _round_up(N, 8)
        if Np != N:
            pad = ((0, 0), (0, 0), (0, Np - N), (0, 0))
            qh, kh, vh = [jnp.pad(t, pad) for t in (qh, kh, vh)]

        # multi-head softmax attention (Pallas kernel 2)
        attn_o = self._attention(qh, kh, vh, N)                   # (B, heads, Np, hd)
        attn_o = attn_o[:, :, :N, :].transpose(0, 2, 1, 3).reshape(B, N, C)

        # depthwise 3x3 local conv on the spatial part of v (Pallas kernel 3)
        v_tok = v2.reshape(B, N, C)
        v_sp = v_tok[:, :Nx, :].reshape(B, H, W, C)
        v_sp_pad = jnp.pad(v_sp, ((0, 0), (1, 1), (1, 1), (0, 0)))
        lc = self._dwconv3x3(v_sp_pad, H, W)                      # (B, H, W, C) f32
        local = jnp.concatenate(
            [lc.reshape(B, Nx, C), v_tok[:, Nx:, :].astype(jnp.float32)], axis=1)

        # fused output projection + residual (Pallas kernel 4)
        if identity is None:
            identity = x_q
        out2 = self._proj_residual(attn_o.reshape(M, C),
                                   local.reshape(M, C),
                                   identity.reshape(M, C))        # (M, C) f32
        out = out2.reshape(B, N, C)
        return out[:, :Nx], out[:, Nx:]


# ---------------------------------------------------------------------------
# Pure-JAX f32 reference of the PyTorch forward (sr_ratio == 1, eval mode)
# ---------------------------------------------------------------------------
def _reference(mod, x, H, W, msg_tokens, identity=None):
    B, Nx, C = x.shape
    heads, hd = mod.num_heads, C // mod.num_heads
    x_q = jnp.concatenate([x, msg_tokens], axis=1)
    N = x_q.shape[1]
    q = (x_q @ mod.wq.T).reshape(B, N, heads, hd).transpose(0, 2, 1, 3)
    kv = (x_q @ mod.wkv.T).reshape(B, N, 2, heads, hd).transpose(2, 0, 3, 1, 4)
    k, v = kv[0], kv[1]
    attn = jax.nn.softmax(jnp.einsum('bhqd,bhkd->bhqk', q, k) * mod.scale, axis=-1)
    attn_out = jnp.einsum('bhqk,bhkd->bhqd', attn, v).transpose(0, 2, 1, 3).reshape(B, N, C)
    v_tok = v.transpose(0, 2, 1, 3).reshape(B, N, C)
    v_img = v_tok[:, :Nx, :].transpose(0, 2, 1).reshape(B, C, H, W)
    lc = jax.lax.conv_general_dilated(
        v_img, mod.w_lc, (1, 1), ((1, 1), (1, 1)),
        feature_group_count=C,
        dimension_numbers=('NCHW', 'OIHW', 'NCHW')) + mod.b_lc[None, :, None, None]
    local = jnp.concatenate(
        [lc.reshape(B, C, Nx).transpose(0, 2, 1), v_tok[:, Nx:, :]], axis=1)
    y = (attn_out + local) @ mod.wproj.T + mod.bproj
    ident = x_q if identity is None else identity
    out = ident + y
    return out[:, :Nx], out[:, Nx:]


if __name__ == "__main__":
    key = jax.random.PRNGKey(0)
    kx, km, kw = jax.random.split(key, 3)

    B, H, W, C = 2, 16, 16, 32          # spatial 16x16 -> 256 image tokens
    NUM_HEADS, MSG_N = 8, 8             # 8 msg tokens, hidden dim 32

    x = jax.random.normal(kx, (B, H * W, C), dtype=jnp.float32)
    msg_tokens = jax.random.normal(km, (B, MSG_N, C), dtype=jnp.float32)

    mod = AttentionPallas(dim=C, num_heads=NUM_HEADS, sr_ratio=1, key=kw)

    out_x, out_msg = mod(x, H, W, msg_tokens=msg_tokens)
    jax.block_until_ready((out_x, out_msg))

    ref_x, ref_msg = _reference(mod, x, H, W, msg_tokens)
    # bf16 MXU inputs with f32 accumulation -> compare at bf16-level tolerance.
    assert np.allclose(np.asarray(out_x), np.asarray(ref_x), atol=2e-2, rtol=2e-2)
    assert np.allclose(np.asarray(out_msg), np.asarray(ref_msg), atol=2e-2, rtol=2e-2)

    print("KERNEL_OK")
</pallas_src>

<mosaic_0001>
module attributes {stable_mosaic.version = 11 : i64} {
  func.func @_matmul_kernel(%arg0: i32, %arg1: memref<132x128xbf16, #tpu.memory_space<vmem>>, %arg2: memref<128x512xbf16, #tpu.memory_space<vmem>>, %arg3: memref<132x512xbf16, #tpu.memory_space<vmem>>) attributes {dimension_semantics = [#tpu.dimension_semantics<parallel>], iteration_bounds = array<i64: 1>, scalar_prefetch = 0 : i64, scratch_operands = 0 : i64, tpu.core_type = #tpu.core_type<tc>, window_params = [{transform_indices = @transform_0, window_bounds = array<i64: 132, 128>}, {pipeline_mode = #tpu.pipeline_mode<synchronous>, transform_indices = @transform_1, window_bounds = array<i64: 128, 512>}, {transform_indices = @transform_2, window_bounds = array<i64: 132, 512>}]} {
    %c0 = arith.constant 0 : index
    %c0_0 = arith.constant 0 : index
    %0 = vector.load %arg1[%c0, %c0_0] : memref<132x128xbf16, #tpu.memory_space<vmem>>, vector<132x128xbf16>
    %c0_1 = arith.constant 0 : index
    %c0_2 = arith.constant 0 : index
    %1 = vector.load %arg2[%c0_1, %c0_2] : memref<128x512xbf16, #tpu.memory_space<vmem>>, vector<128x512xbf16>
    %cst = arith.constant dense<0.000000e+00> : vector<132x512xf32>
    %2 = tpu.matmul %0, %1, %cst {dimension_numbers = #tpu.dot_dimension_numbers<[1], [0], [0], [1], [0, 0, 1, 1], [], []>} : vector<132x128xbf16>, vector<128x512xbf16>, vector<132x512xf32> -> vector<132x512xf32>
    %3 = arith.truncf %2 : vector<132x512xf32> to vector<132x512xbf16>
    %c0_3 = arith.constant 0 : index
    %c0_4 = arith.constant 0 : index
    %4 = vector.load %arg3[%c0_3, %c0_4] : memref<132x512xbf16, #tpu.memory_space<vmem>>, vector<132x512xbf16>
    tpu.vector_store %arg3[%c0_3, %c0_4], %3 {strides = array<i32>} : memref<132x512xbf16, #tpu.memory_space<vmem>>, vector<132x512xbf16>,
    return
  }
  func.func @transform_0(%arg0: i32) -> (i32, i32) {
    %c0_i32 = arith.constant 0 : i32
    %c0_i32_0 = arith.constant 0 : i32
    return %arg0, %c0_i32 : i32, i32
  }
  func.func @transform_1(%arg0: i32) -> (i32, i32) {
    %c0_i32 = arith.constant 0 : i32
    %c0_i32_0 = arith.constant 0 : i32
    %c0_i32_1 = arith.constant 0 : i32
    return %c0_i32, %c0_i32_0 : i32, i32
  }
  func.func @transform_2(%arg0: i32) -> (i32, i32) {
    %c0_i32 = arith.constant 0 : i32
    %c0_i32_0 = arith.constant 0 : i32
    return %arg0, %c0_i32 : i32, i32
  }
}

</mosaic_0001>

<llo_original>
// kernel: tpu_custom_call.1
$region0: #{tpu_custom_call.1}
  #allocation0 [shape = 'u32[]', space=smem, size = 0x4, offset = 0x4, fixed_abs, tag = 'smem constant byte address 0x4 - core index']
  #allocation1 [shape = 'u32[144,128]{1,0:T(1,128)}', space=vmem, size = 0x12000, scoped, tag = 'internal scratch']
  %s0 = inlined_call_operand.hbm [shape: bf16[132,128], index: 0, kind: input, shape index: {}]
  %s1 = inlined_call_operand.hbm [shape: bf16[128,512], index: 1, kind: input, shape index: {}]
  %s2 = inlined_call_operand.hbm [shape: bf16[132,512], index: 2, kind: output, shape index: {}]
  %s3 = sld [smem:[#allocation0]]
  $region26: #{tpu_custom_call.1} parent=0
    _
  %s5 = ssub.s32 1, %s3
  %s6 = scalar_select 0, %s5, %s3
  $region1: #{tpu_custom_call.1} parent=0
    #allocation2 [shape = 'u8[34816]{0}', space=vmem, size = 0x8800, scoped, tag = 'input window, operand 0, single buffered']
    #allocation3 [shape = 's32[1]{0}', space=sflag, size = 0x4, scoped, tag = 'scoped memory for tpu_custom_call.1']
    #allocation4 [shape = 's32[1]{0}', space=sflag, size = 0x4, scoped, tag = 'scoped memory for tpu_custom_call.1']
    #allocation5 [shape = 'u8[131072]{0}', space=vmem, size = 0x20000, scoped, tag = 'input window, operand 1, single buffered']
    #allocation6 [shape = 's32[1]{0}', space=sflag, size = 0x4, scoped, tag = 'scoped memory for tpu_custom_call.1']
    #allocation7 [shape = 'u8[139264]{0}', space=vmem, size = 0x22000, scoped, tag = 'output window, operand 0, single buffered']
    %7 = vsyncpa [#allocation3], 0
    %8 = vsyncpa [#allocation6], 0
    %9 = vsyncpa [#allocation4], 0
    // Predicated region
    $region2: #{tpu_custom_call.1} parent=1 // pred_check
      _
    $region3: #{tpu_custom_call.1} parent=1 // pred_check_branch
      %11 = sbr.rel (0) target = $region5
    $region4: #{tpu_custom_call.1} parent=1 // pred_region
      %s13 = ssub.s32 1088, 1088
      %14 = vsyncadd [#allocation3], %s13
      %s15 = sshll.u32 [#allocation2], 4
      %s16 = int_to_ptr.vmem [resolvable:$true] %s15
      %21 = dma.hbm_to_vmem [thread:$0]  %s0, 1088, %s16, [#allocation3], 64, 64, 4
    $region5: #{tpu_custom_call.1} parent=1 // pred_fallthru
      _
    // Predicated region
    $region6: #{tpu_custom_call.1} parent=1 // pred_check
      _
    $region7: #{tpu_custom_call.1} parent=1 // pred_check_branch
      %23 = sbr.rel (0) target = $region9
    $region8: #{tpu_custom_call.1} parent=1 // pred_region
      %s25 = ssub.s32 4096, 4096
      %26 = vsyncadd [#allocation6], %s25
      %s27 = sshll.u32 [#allocation5], 4
      %s28 = int_to_ptr.vmem [resolvable:$true] %s27
      %33 = dma.hbm_to_vmem [thread:$0]  %s1, 4096, %s28, [#allocation6], 256, 256, 16
    $region9: #{tpu_custom_call.1} parent=1 // pred_fallthru
      _
    // Predicated region
    $region10: #{tpu_custom_call.1} parent=1 // pred_check
      _
    $region11: #{tpu_custom_call.1} parent=1 // pred_check_branch
      %35 = sbr.rel (0) target = $region13
    $region12: #{tpu_custom_call.1} parent=1 // pred_region
      %36 = dma.done [#allocation3], 1088
    $region13: #{tpu_custom_call.1} parent=1 // pred_fallthru
      _
    // Predicated region
    $region14: #{tpu_custom_call.1} parent=1 // pred_check
      _
    $region15: #{tpu_custom_call.1} parent=1 // pred_check_branch
      %38 = sbr.rel (0) target = $region17
    $region16: #{tpu_custom_call.1} parent=1 // pred_region
      %39 = dma.done [#allocation6], 4096
    $region17: #{tpu_custom_call.1} parent=1 // pred_fallthru
      _
    %v41 = vld [vmem:[#allocation2] sm:$0xf]
    %v42 = vld [vmem:[#allocation2 + $0x4] sm:$0xf]
    %v43 = vld [vmem:[#allocation2 + $0x8] sm:$0xf]
    %v44 = vld [vmem:[#allocation2 + $0xc] sm:$0xf]
    %v45 = vld [vmem:[#allocation2 + $0x10] sm:$0xf]
    %v46 = vld [vmem:[#allocation2 + $0x14] sm:$0xf]
    %v47 = vld [vmem:[#allocation2 + $0x18] sm:$0xf]
    %v48 = vld [vmem:[#allocation2 + $0x1c] sm:$0xf]
    %v49 = vld [vmem:[#allocation2 + $0x20] sm:$0xf]
    %v50 = vld [vmem:[#allocation2 + $0x24] sm:$0xf]
    %v51 = vld [vmem:[#allocation2 + $0x28] sm:$0xf]
    %v52 = vld [vmem:[#allocation2 + $0x2c] sm:$0xf]
    %v53 = vld [vmem:[#allocation2 + $0x30] sm:$0xf]
    %v54 = vld [vmem:[#allocation2 + $0x34] sm:$0xf]
    %v55 = vld [vmem:[#allocation2 + $0x38] sm:$0xf]
    %v56 = vld [vmem:[#allocation2 + $0x3c] sm:$0xf]
    %v57 = vld [vmem:[#allocation2 + $0x40] sm:$0x3]
    %v58 = vld [vmem:[#allocation5] sm:$0xff]
    %v59 = vld [vmem:[#allocation5 + $0x8] sm:$0xff]
    %v60 = vld [vmem:[#allocation5 + $0x10] sm:$0xff]
    %v61 = vld [vmem:[#allocation5 + $0x18] sm:$0xff]
    %v62 = vld [vmem:[#allocation5 + $0x20] sm:$0xff]
    %v63 = vld [vmem:[#allocation5 + $0x28] sm:$0xff]
    %v64 = vld [vmem:[#allocation5 + $0x30] sm:$0xff]
    %v65 = vld [vmem:[#allocation5 + $0x38] sm:$0xff]
    %v66 = vld [vmem:[#allocation5 + $0x40] sm:$0xff]
    %v67 = vld [vmem:[#allocation5 + $0x48] sm:$0xff]
    %v68 = vld [vmem:[#allocation5 + $0x50] sm:$0xff]
    %v69 = vld [vmem:[#allocation5 + $0x58] sm:$0xff]
    %v70 = vld [vmem:[#allocation5 + $0x60] sm:$0xff]
    %v71 = vld [vmem:[#allocation5 + $0x68] sm:$0xff]
    %v72 = vld [vmem:[#allocation5 + $0x70] sm:$0xff]
    %v73 = vld [vmem:[#allocation5 + $0x78] sm:$0xff]
    %v74 = vld [vmem:[#allocation5 + $0x80] sm:$0xff]
    %v75 = vld [vmem:[#allocation5 + $0x88] sm:$0xff]
    %v76 = vld [vmem:[#allocation5 + $0x90] sm:$0xff]
    %v77 = vld [vmem:[#allocation5 + $0x98] sm:$0xff]
    %v78 = vld [vmem:[#allocation5 + $0xa0] sm:$0xff]
    %v79 = vld [vmem:[#allocation5 + $0xa8] sm:$0xff]
    %v80 = vld [vmem:[#allocation5 + $0xb0] sm:$0xff]
    %v81 = vld [vmem:[#allocation5 + $0xb8] sm:$0xff]
    %v82 = vld [vmem:[#allocation5 + $0xc0] sm:$0xff]
    %v83 = vld [vmem:[#allocation5 + $0xc8] sm:$0xff]
    %v84 = vld [vmem:[#allocation5 + $0xd0] sm:$0xff]
    %v85 = vld [vmem:[#allocation5 + $0xd8] sm:$0xff]
    %v86 = vld [vmem:[#allocation5 + $0xe0] sm:$0xff]
    %v87 = vld [vmem:[#allocation5 + $0xe8] sm:$0xff]
    %v88 = vld [vmem:[#allocation5 + $0xf0] sm:$0xff]
    %v89 = vld [vmem:[#allocation5 + $0xf8] sm:$0xff]
    %v107 = vunpack.c.l.b16 %v41
    %v108 = vunpack.c.l.b16 %v42
    %v109 = vunpack.c.l.b16 %v43
    %v110 = vunpack.c.l.b16 %v44
    %v111 = vunpack.c.l.b16 %v45
    %v112 = vunpack.c.l.b16 %v46
    %v113 = vunpack.c.l.b16 %v47
    %v114 = vunpack.c.l.b16 %v48
    %v115 = vunpack.c.l.b16 %v49
    %v116 = vunpack.c.l.b16 %v50
    %v117 = vunpack.c.l.b16 %v51
    %v118 = vunpack.c.l.b16 %v52
    %v119 = vunpack.c.l.b16 %v53
    %v120 = vunpack.c.l.b16 %v54
    %v121 = vunpack.c.l.b16 %v55
    %v122 = vunpack.c.l.b16 %v56
    %v123 = vunpack.c.l.b16 %v57
    %v124 = vpack.c.b16 %v108, %v107
    %v125 = vpack.c.b16 %v110, %v109
    %v126 = vpack.c.b16 %v112, %v111
    %v127 = vpack.c.b16 %v114, %v113
    %v128 = vpack.c.b16 %v116, %v115
    %v129 = vpack.c.b16 %v118, %v117
    %v130 = vpack.c.b16 %v120, %v119
    %v131 = vpack.c.b16 %v122, %v121
    %v132 = vpack.c.b16 %v123, %v123
    %v174 = vunpack.c.l.b16 %v58
    %v175 = vunpack.c.h.b16 %v58
    %v176 = vunpack.c.l.b16 %v59
    %v177 = vunpack.c.h.b16 %v59
    %v178 = vunpack.c.l.b16 %v60
    %v179 = vunpack.c.h.b16 %v60
    %v180 = vunpack.c.l.b16 %v61
    %v181 = vunpack.c.h.b16 %v61
    %v182 = vunpack.c.l.b16 %v62
    %v183 = vunpack.c.h.b16 %v62
    %v184 = vunpack.c.l.b16 %v63
    %v185 = vunpack.c.h.b16 %v63
    %v186 = vunpack.c.l.b16 %v64
    %v187 = vunpack.c.h.b16 %v64
    %v188 = vunpack.c.l.b16 %v65
    %v189 = vunpack.c.h.b16 %v65
    %v190 = vunpack.c.l.b16 %v66
    %v191 = vunpack.c.h.b16 %v66
    %v192 = vunpack.c.l.b16 %v67
    %v193 = vunpack.c.h.b16 %v67
    %v194 = vunpack.c.l.b16 %v68
    %v195 = vunpack.c.h.b16 %v68
    %v196 = vunpack.c.l.b16 %v69
    %v197 = vunpack.c.h.b16 %v69
    %v198 = vunpack.c.l.b16 %v70
    %v199 = vunpack.c.h.b16 %v70
    %v200 = vunpack.c.l.b16 %v71
    %v201 = vunpack.c.h.b16 %v71
    %v202 = vunpack.c.l.b16 %v72
    %v203 = vunpack.c.h.b16 %v72
    %v204 = vunpack.c.l.b16 %v73
    %v205 = vunpack.c.h.b16 %v73
    %v206 = vunpack.c.l.b16 %v74
    %v207 = vunpack.c.h.b16 %v74
    %v208 = vunpack.c.l.b16 %v75
    %v209 = vunpack.c.h.b16 %v75
    %v210 = vunpack.c.l.b16 %v76
    %v211 = vunpack.c.h.b16 %v76
    %v212 = vunpack.c.l.b16 %v77
    %v213 = vunpack.c.h.b16 %v77
    %v214 = vunpack.c.l.b16 %v78
    %v215 = vunpack.c.h.b16 %v78
    %v216 = vunpack.c.l.b16 %v79
    %v217 = vunpack.c.h.b16 %v79
    %v218 = vunpack.c.l.b16 %v80
    %v219 = vunpack.c.h.b16 %v80
    %v220 = vunpack.c.l.b16 %v81
    %v221 = vunpack.c.h.b16 %v81
    %v222 = vunpack.c.l.b16 %v82
    %v223 = vunpack.c.h.b16 %v82
    %v224 = vunpack.c.l.b16 %v83
    %v225 = vunpack.c.h.b16 %v83
    %v226 = vunpack.c.l.b16 %v84
    %v227 = vunpack.c.h.b16 %v84
    %v228 = vunpack.c.l.b16 %v85
    %v229 = vunpack.c.h.b16 %v85
    %v230 = vunpack.c.l.b16 %v86
    %v231 = vunpack.c.h.b16 %v86
    %v232 = vunpack.c.l.b16 %v87
    %v233 = vunpack.c.h.b16 %v87
    %v234 = vunpack.c.l.b16 %v88
    %v235 = vunpack.c.h.b16 %v88
    %v236 = vunpack.c.l.b16 %v89
    %v237 = vunpack.c.h.b16 %v89
    %v238 = vpack.c.b16 %v178, %v174
    %v239 = vpack.c.b16 %v179, %v175
    %v240 = vpack.c.b16 %v180, %v176
    %v241 = vpack.c.b16 %v181, %v177
    %v242 = vpack.c.b16 %v186, %v182
    %v243 = vpack.c.b16 %v187, %v183
    %v244 = vpack.c.b16 %v188, %v184
    %v245 = vpack.c.b16 %v189, %v185
    %v246 = vpack.c.b16 %v194, %v190
    %v247 = vpack.c.b16 %v195, %v191
    %v248 = vpack.c.b16 %v196, %v192
    %v249 = vpack.c.b16 %v197, %v193
    %v250 = vpack.c.b16 %v202, %v198
    %v251 = vpack.c.b16 %v203, %v199
    %v252 = vpack.c.b16 %v204, %v200
    %v253 = vpack.c.b16 %v205, %v201
    %v254 = vpack.c.b16 %v210, %v206
    %v255 = vpack.c.b16 %v211, %v207
    %v256 = vpack.c.b16 %v212, %v208
    %v257 = vpack.c.b16 %v213, %v209
    %v258 = vpack.c.b16 %v218, %v214
    %v259 = vpack.c.b16 %v219, %v215
    %v260 = vpack.c.b16 %v220, %v216
    %v261 = vpack.c.b16 %v221, %v217
    %v262 = vpack.c.b16 %v226, %v222
    %v263 = vpack.c.b16 %v227, %v223
    %v264 = vpack.c.b16 %v228, %v224
    %v265 = vpack.c.b16 %v229, %v225
    %v266 = vpack.c.b16 %v234, %v230
    %v267 = vpack.c.b16 %v235, %v231
    %v268 = vpack.c.b16 %v236, %v232
    %v269 = vpack.c.b16 %v237, %v233
    %302 = vmatprep.subr.bf16.mxu0 %v239
    %303 = vmatpush1.bf16.msra.mxu0 %v238
    %304 = vmatprep.subr.bf16.mxu0 %v243
    %305 = vmatpush1.bf16.msra.mxu0 %v242
    %306 = vmatprep.subr.bf16.mxu0 %v247
    %307 = vmatpush1.bf16.msra.mxu0 %v246
    %308 = vmatprep.subr.bf16.mxu0 %v251
    %309 = vmatpush1.bf16.msra.mxu0 %v250
    %310 = vmatprep.subr.bf16.mxu0 %v255
    %311 = vmatpush1.bf16.msra.mxu0 %v254
    %312 = vmatprep.subr.bf16.mxu0 %v259
    %313 = vmatpush1.bf16.msra.mxu0 %v258
    %314 = vmatprep.subr.bf16.mxu0 %v263
    %315 = vmatpush1.bf16.msra.mxu0 %v262
    %316 = vmatprep.subr.bf16.mxu0 %v267
    %317 = vmatpush1.bf16.msra.mxu0 %v266
    %318 = vmatprep.subr.bf16.mxu0 0
    %319 = vmatpush1.bf16.msra.mxu0 0
    %320 = vmatprep.subr.bf16.mxu0 0
    %321 = vmatpush1.bf16.msra.mxu0 0
    %322 = vmatprep.subr.bf16.mxu0 0
    %323 = vmatpush1.bf16.msra.mxu0 0
    %324 = vmatprep.subr.bf16.mxu0 0
    %325 = vmatpush1.bf16.msra.mxu0 0
    %326 = vmatprep.subr.bf16.mxu0 0
    %327 = vmatpush1.bf16.msra.mxu0 0
    %328 = vmatprep.subr.bf16.mxu0 0
    %329 = vmatpush1.bf16.msra.mxu0 0
    %330 = vmatprep.subr.bf16.mxu0 0
    %331 = vmatpush1.bf16.msra.mxu0 0
    %332 = vmatprep.subr.bf16.mxu0 0
    %333 = vmatpush1.bf16.msra.mxu0 0
    %334 = vmatprep.mubr.bf16.mxu0 0
    %335 = vmatmul.mubr.bf16.gmra.mrb[0].mxu0 %v124
    %v336 = vpop.f32.mrb[0].mxu0
    %v337 = vadd.f32 0.0, %v336
    %v338 = vpop.f32.mrb[0].mxu0
    %v339 = vadd.f32 0.0, %v338
    %v340 = vpop.f32.mrb[0].mxu0
    %v341 = vadd.f32 0.0, %v340
    %v342 = vpop.f32.mrb[0].mxu0
    %v343 = vadd.f32 0.0, %v342
    %344 = vmatprep.mubr.bf16.mxu0 0
    %345 = vmatmul.mubr.bf16.gmra.mrb[0].mxu0 %v125
    %v346 = vpop.f32.mrb[0].mxu0
    %v347 = vadd.f32 0.0, %v346
    %v348 = vpop.f32.mrb[0].mxu0
    %v349 = vadd.f32 0.0, %v348
    %v350 = vpop.f32.mrb[0].mxu0
    %v351 = vadd.f32 0.0, %v350
    %v352 = vpop.f32.mrb[0].mxu0
    %v353 = vadd.f32 0.0, %v352
    %354 = vmatprep.mubr.bf16.mxu0 0
    %355 = vmatmul.mubr.bf16.gmra.mrb[0].mxu0 %v126
    %v356 = vpop.f32.mrb[0].mxu0
    %v357 = vadd.f32 0.0, %v356
    %v358 = vpop.f32.mrb[0].mxu0
    %v359 = vadd.f32 0.0, %v358
    %v360 = vpop.f32.mrb[0].mxu0
    %v361 = vadd.f32 0.0, %v360
    %v362 = vpop.f32.mrb[0].mxu0
    %v363 = vadd.f32 0.0, %v362
    %364 = vmatprep.mubr.bf16.mxu0 0
    %365 = vmatmul.mubr.bf16.gmra.mrb[0].mxu0 %v127
    %v366 = vpop.f32.mrb[0].mxu0
    %v367 = vadd.f32 0.0, %v366
    %v368 = vpop.f32.mrb[0].mxu0
    %v369 = vadd.f32 0.0, %v368
    %v370 = vpop.f32.mrb[0].mxu0
    %v371 = vadd.f32 0.0, %v370
    %v372 = vpop.f32.mrb[0].mxu0
    %v373 = vadd.f32 0.0, %v372
    %374 = vmatprep.mubr.bf16.mxu0 0
    %375 = vmatmul.mubr.bf16.gmra.mrb[0].mxu0 %v128
    %v376 = vpop.f32.mrb[0].mxu0
    %v377 = vadd.f32 0.0, %v376
    %v378 = vpop.f32.mrb[0].mxu0
    %v379 = vadd.f32 0.0, %v378
    %v380 = vpop.f32.mrb[0].mxu0
    %v381 = vadd.f32 0.0, %v380
    %v382 = vpop.f32.mrb[0].mxu0
    %v383 = vadd.f32 0.0, %v382
    %384 = vmatprep.mubr.bf16.mxu0 0
    %385 = vmatmul.mubr.bf16.gmra.mrb[0].mxu0 %v129
    %v386 = vpop.f32.mrb[0].mxu0
    %v387 = vadd.f32 0.0, %v386
    %v388 = vpop.f32.mrb[0].mxu0
    %v389 = vadd.f32 0.0, %v388
    %v390 = vpop.f32.mrb[0].mxu0
    %v391 = vadd.f32 0.0, %v390
    %v392 = vpop.f32.mrb[0].mxu0
    %v393 = vadd.f32 0.0, %v392
    %394 = vmatprep.mubr.bf16.mxu0 0
    %395 = vmatmul.mubr.bf16.gmra.mrb[0].mxu0 %v130
    %v396 = vpop.f32.mrb[0].mxu0
    %v397 = vadd.f32 0.0, %v396
    %v398 = vpop.f32.mrb[0].mxu0
    %v399 = vadd.f32 0.0, %v398
    %v400 = vpop.f32.mrb[0].mxu0
    %v401 = vadd.f32 0.0, %v400
    %v402 = vpop.f32.mrb[0].mxu0
    %v403 = vadd.f32 0.0, %v402
    %404 = vmatprep.mubr.bf16.mxu0 0
    %405 = vmatmul.mubr.bf16.gmra.mrb[0].mxu0 %v131
    %v406 = vpop.f32.mrb[0].mxu0
    %v407 = vadd.f32 0.0, %v406
    %v408 = vpop.f32.mrb[0].mxu0
    %v409 = vadd.f32 0.0, %v408
    %v410 = vpop.f32.mrb[0].mxu0
    %v411 = vadd.f32 0.0, %v410
    %v412 = vpop.f32.mrb[0].mxu0
    %v413 = vadd.f32 0.0, %v412
    %414 = vmatprep.mubr.bf16.mxu0 0
    %415 = vmatmul.mubr.bf16.gmra.mrb[0].mxu0 %v132
    %v416 = vpop.f32.mrb[0].mxu0
    %v417 = vadd.f32 0.0, %v416
    %v418 = vpop.f32.mrb[0].mxu0
    %v419 = vadd.f32 0.0, %v418
    %v420 = vpop.f32.mrb[0].mxu0
    %v421 = vpop.f32.mrb[0].mxu0
    %422 = vdwg.mxu0
    %423 = vmatprep.subr.bf16.mxu0 %v241
    %424 = vmatpush1.bf16.msra.mxu0 %v240
    %425 = vmatprep.subr.bf16.mxu0 %v245
    %426 = vmatpush1.bf16.msra.mxu0 %v244
    %427 = vmatprep.subr.bf16.mxu0 %v249
    %428 = vmatpush1.bf16.msra.mxu0 %v248
    %429 = vmatprep.subr.bf16.mxu0 %v253
    %430 = vmatpush1.bf16.msra.mxu0 %v252
    %431 = vmatprep.subr.bf16.mxu0 %v257
    %432 = vmatpush1.bf16.msra.mxu0 %v256
    %433 = vmatprep.subr.bf16.mxu0 %v261
    %434 = vmatpush1.bf16.msra.mxu0 %v260
    %435 = vmatprep.subr.bf16.mxu0 %v265
    %436 = vmatpush1.bf16.msra.mxu0 %v264
    %437 = vmatprep.subr.bf16.mxu0 %v269
    %438 = vmatpush1.bf16.msra.mxu0 %v268
    %439 = vmatprep.subr.bf16.mxu0 0
    %440 = vmatpush1.bf16.msra.mxu0 0
    %441 = vmatprep.subr.bf16.mxu0 0
    %442 = vmatpush1.bf16.msra.mxu0 0
    %443 = vmatprep.subr.bf16.mxu0 0
    %444 = vmatpush1.bf16.msra.mxu0 0
    %445 = vmatprep.subr.bf16.mxu0 0
    %446 = vmatpush1.bf16.msra.mxu0 0
    %447 = vmatprep.subr.bf16.mxu0 0
    %448 = vmatpush1.bf16.msra.mxu0 0
    %449 = vmatprep.subr.bf16.mxu0 0
    %450 = vmatpush1.bf16.msra.mxu0 0
    %451 = vmatprep.subr.bf16.mxu0 0
    %452 = vmatpush1.bf16.msra.mxu0 0
    %453 = vmatprep.subr.bf16.mxu0 0
    %454 = vmatpush1.bf16.msra.mxu0 0
    %455 = vmatprep.mubr.bf16.mxu0 0
    %456 = vmatmul.mubr.bf16.gmra.mrb[0].mxu0 %v124
    %v457 = vpop.f32.mrb[0].mxu0
    %v458 = vadd.f32 0.0, %v457
    %v459 = vpop.f32.mrb[0].mxu0
    %v460 = vadd.f32 0.0, %v459
    %v461 = vpop.f32.mrb[0].mxu0
    %v462 = vadd.f32 0.0, %v461
    %v463 = vpop.f32.mrb[0].mxu0
    %v464 = vadd.f32 0.0, %v463
    %465 = vmatprep.mubr.bf16.mxu0 0
    %466 = vmatmul.mubr.bf16.gmra.mrb[0].mxu0 %v125
    %v467 = vpop.f32.mrb[0].mxu0
    %v468 = vadd.f32 0.0, %v467
    %v469 = vpop.f32.mrb[0].mxu0
    %v470 = vadd.f32 0.0, %v469
    %v471 = vpop.f32.mrb[0].mxu0
    %v472 = vadd.f32 0.0, %v471
    %v473 = vpop.f32.mrb[0].mxu0
    %v474 = vadd.f32 0.0, %v473
    %475 = vmatprep.mubr.bf16.mxu0 0
    %476 = vmatmul.mubr.bf16.gmra.mrb[0].mxu0 %v126
    %v477 = vpop.f32.mrb[0].mxu0
    %v478 = vadd.f32 0.0, %v477
    %v479 = vpop.f32.mrb[0].mxu0
    %v480 = vadd.f32 0.0, %v479
    %v481 = vpop.f32.mrb[0].mxu0
    %v482 = vadd.f32 0.0, %v481
    %v483 = vpop.f32.mrb[0].mxu0
    %v484 = vadd.f32 0.0, %v483
    %485 = vmatprep.mubr.bf16.mxu0 0
    %486 = vmatmul.mubr.bf16.gmra.mrb[0].mxu0 %v127
    %v487 = vpop.f32.mrb[0].mxu0
    %v488 = vadd.f32 0.0, %v487
    %v489 = vpop.f32.mrb[0].mxu0
    %v490 = vadd.f32 0.0, %v489
    %v491 = vpop.f32.mrb[0].mxu0
    %v492 = vadd.f32 0.0, %v491
    %v493 = vpop.f32.mrb[0].mxu0
    %v494 = vadd.f32 0.0, %v493
    %495 = vmatprep.mubr.bf16.mxu0 0
    %496 = vmatmul.mubr.bf16.gmra.mrb[0].mxu0 %v128
    %v497 = vpop.f32.mrb[0].mxu0
    %v498 = vadd.f32 0.0, %v497
    %v499 = vpop.f32.mrb[0].mxu0
    %v500 = vadd.f32 0.0, %v499
    %v501 = vpop.f32.mrb[0].mxu0
    %v502 = vadd.f32 0.0, %v501
    %v503 = vpop.f32.mrb[0].mxu0
    %v504 = vadd.f32 0.0, %v503
    %505 = vmatprep.mubr.bf16.mxu0 0
    %506 = vmatmul.mubr.bf16.gmra.mrb[0].mxu0 %v129
    %v507 = vpop.f32.mrb[0].mxu0
    %v508 = vadd.f32 0.0, %v507
    %v509 = vpop.f32.mrb[0].mxu0
    %v510 = vadd.f32 0.0, %v509
    %v511 = vpop.f32.mrb[0].mxu0
    %v512 = vadd.f32 0.0, %v511
    %v513 = vpop.f32.mrb[0].mxu0
    %v514 = vadd.f32 0.0, %v513
    %515 = vmatprep.mubr.bf16.mxu0 0
    %516 = vmatmul.mubr.bf16.gmra.mrb[0].mxu0 %v130
    %v517 = vpop.f32.mrb[0].mxu0
    %v518 = vadd.f32 0.0, %v517
    %v519 = vpop.f32.mrb[0].mxu0
    %v520 = vadd.f32 0.0, %v519
    %v521 = vpop.f32.mrb[0].mxu0
    %v522 = vadd.f32 0.0, %v521
    %v523 = vpop.f32.mrb[0].mxu0
    %v524 = vadd.f32 0.0, %v523
    %525 = vmatprep.mubr.bf16.mxu0 0
    %526 = vmatmul.mubr.bf16.gmra.mrb[0].mxu0 %v131
    %v527 = vpop.f32.mrb[0].mxu0
    %v528 = vadd.f32 0.0, %v527
    %v529 = vpop.f32.mrb[0].mxu0
    %v530 = vadd.f32 0.0, %v529
    %v531 = vpop.f32.mrb[0].mxu0
    %v532 = vadd.f32 0.0, %v531
    %v533 = vpop.f32.mrb[0].mxu0
    %v534 = vadd.f32 0.0, %v533
    %535 = vmatprep.mubr.bf16.mxu0 0
    %536 = vmatmul.mubr.bf16.gmra.mrb[0].mxu0 %v132
    %v537 = vpop.f32.mrb[0].mxu0
    %v538 = vadd.f32 0.0, %v537
    %v539 = vpop.f32.mrb[0].mxu0
    %v540 = vadd.f32 0.0, %v539
    %v541 = vpop.f32.mrb[0].mxu0
    %v542 = vpop.f32.mrb[0].mxu0
    %543 = vdwg.mxu0
    %v544 = vpack.c.bf16 %v341, %v337
    %v545 = vpack.c.bf16 %v343, %v339
    %v546 = vpack.c.bf16 %v462, %v458
    %v547 = vpack.c.bf16 %v464, %v460
    %v548 = vpack.c.bf16 %v351, %v347
    %v549 = vpack.c.bf16 %v353, %v349
    %v550 = vpack.c.bf16 %v472, %v468
    %v551 = vpack.c.bf16 %v474, %v470
    %v552 = vpack.c.bf16 %v361, %v357
    %v553 = vpack.c.bf16 %v363, %v359
    %v554 = vpack.c.bf16 %v482, %v478
    %v555 = vpack.c.bf16 %v484, %v480
    %v556 = vpack.c.bf16 %v371, %v367
    %v557 = vpack.c.bf16 %v373, %v369
    %v558 = vpack.c.bf16 %v492, %v488
    %v559 = vpack.c.bf16 %v494, %v490
    %v560 = vpack.c.bf16 %v381, %v377
    %v561 = vpack.c.bf16 %v383, %v379
    %v562 = vpack.c.bf16 %v502, %v498
    %v563 = vpack.c.bf16 %v504, %v500
    %v564 = vpack.c.bf16 %v391, %v387
    %v565 = vpack.c.bf16 %v393, %v389
    %v566 = vpack.c.bf16 %v512, %v508
    %v567 = vpack.c.bf16 %v514, %v510
    %v568 = vpack.c.bf16 %v401, %v397
    %v569 = vpack.c.bf16 %v403, %v399
    %v570 = vpack.c.bf16 %v522, %v518
    %v571 = vpack.c.bf16 %v524, %v520
    %v572 = vpack.c.bf16 %v411, %v407
    %v573 = vpack.c.bf16 %v413, %v409
    %v574 = vpack.c.bf16 %v532, %v528
    %v575 = vpack.c.bf16 %v534, %v530
    %v576 = vpack.c.bf16 %v417, %v417
    %v577 = vpack.c.bf16 %v419, %v419
    %v578 = vpack.c.bf16 %v538, %v538
    %v579 = vpack.c.bf16 %v540, %v540
    %v616 = vunpack.c.l.b16 %v544
    %v617 = vunpack.c.l.b16 %v545
    %v618 = vunpack.c.l.b16 %v546
    %v619 = vunpack.c.l.b16 %v547
    %v620 = vunpack.c.h.b16 %v544
    %v621 = vunpack.c.h.b16 %v545
    %v622 = vunpack.c.h.b16 %v546
    %v623 = vunpack.c.h.b16 %v547
    %v624 = vunpack.c.l.b16 %v548
    %v625 = vunpack.c.l.b16 %v549
    %v626 = vunpack.c.l.b16 %v550
    %v627 = vunpack.c.l.b16 %v551
    %v628 = vunpack.c.h.b16 %v548
    %v629 = vunpack.c.h.b16 %v549
    %v630 = vunpack.c.h.b16 %v550
    %v631 = vunpack.c.h.b16 %v551
    %v632 = vunpack.c.l.b16 %v552
    %v633 = vunpack.c.l.b16 %v553
    %v634 = vunpack.c.l.b16 %v554
    %v635 = vunpack.c.l.b16 %v555
    %v636 = vunpack.c.h.b16 %v552
    %v637 = vunpack.c.h.b16 %v553
    %v638 = vunpack.c.h.b16 %v554
    %v639 = vunpack.c.h.b16 %v555
    %v640 = vunpack.c.l.b16 %v556
    %v641 = vunpack.c.l.b16 %v557
    %v642 = vunpack.c.l.b16 %v558
    %v643 = vunpack.c.l.b16 %v559
    %v644 = vunpack.c.h.b16 %v556
    %v645 = vunpack.c.h.b16 %v557
    %v646 = vunpack.c.h.b16 %v558
    %v647 = vunpack.c.h.b16 %v559
    %v648 = vunpack.c.l.b16 %v560
    %v649 = vunpack.c.l.b16 %v561
    %v650 = vunpack.c.l.b16 %v562
    %v651 = vunpack.c.l.b16 %v563
    %v652 = vunpack.c.h.b16 %v560
    %v653 = vunpack.c.h.b16 %v561
    %v654 = vunpack.c.h.b16 %v562
    %v655 = vunpack.c.h.b16 %v563
    %v656 = vunpack.c.l.b16 %v564
    %v657 = vunpack.c.l.b16 %v565
    %v658 = vunpack.c.l.b16 %v566
    %v659 = vunpack.c.l.b16 %v567
    %v660 = vunpack.c.h.b16 %v564
    %v661 = vunpack.c.h.b16 %v565
    %v662 = vunpack.c.h.b16 %v566
    %v663 = vunpack.c.h.b16 %v567
    %v664 = vunpack.c.l.b16 %v568
    %v665 = vunpack.c.l.b16 %v569
    %v666 = vunpack.c.l.b16 %v570
    %v667 = vunpack.c.l.b16 %v571
    %v668 = vunpack.c.h.b16 %v568
    %v669 = vunpack.c.h.b16 %v569
    %v670 = vunpack.c.h.b16 %v570
    %v671 = vunpack.c.h.b16 %v571
    %v672 = vunpack.c.l.b16 %v572
    %v673 = vunpack.c.l.b16 %v573
    %v674 = vunpack.c.l.b16 %v574
    %v675 = vunpack.c.l.b16 %v575
    %v676 = vunpack.c.h.b16 %v572
    %v677 = vunpack.c.h.b16 %v573
    %v678 = vunpack.c.h.b16 %v574
    %v679 = vunpack.c.h.b16 %v575
    %v680 = vunpack.c.l.b16 %v576
    %v681 = vunpack.c.l.b16 %v577
    %v682 = vunpack.c.l.b16 %v578
    %v683 = vunpack.c.l.b16 %v579
    %v684 = vpack.c.b16 %v617, %v616
    %v685 = vpack.c.b16 %v619, %v618
    %v686 = vpack.c.b16 %v621, %v620
    %v687 = vpack.c.b16 %v623, %v622
    %v688 = vpack.c.b16 %v625, %v624
    %v689 = vpack.c.b16 %v627, %v626
    %v690 = vpack.c.b16 %v629, %v628
    %v691 = vpack.c.b16 %v631, %v630
    %v692 = vpack.c.b16 %v633, %v632
    %v693 = vpack.c.b16 %v635, %v634
    %v694 = vpack.c.b16 %v637, %v636
    %v695 = vpack.c.b16 %v639, %v638
    %v696 = vpack.c.b16 %v641, %v640
    %v697 = vpack.c.b16 %v643, %v642
    %v698 = vpack.c.b16 %v645, %v644
    %v699 = vpack.c.b16 %v647, %v646
    %v700 = vpack.c.b16 %v649, %v648
    %v701 = vpack.c.b16 %v651, %v650
    %v702 = vpack.c.b16 %v653, %v652
    %v703 = vpack.c.b16 %v655, %v654
    %v704 = vpack.c.b16 %v657, %v656
    %v705 = vpack.c.b16 %v659, %v658
    %v706 = vpack.c.b16 %v661, %v660
    %v707 = vpack.c.b16 %v663, %v662
    %v708 = vpack.c.b16 %v665, %v664
    %v709 = vpack.c.b16 %v667, %v666
    %v710 = vpack.c.b16 %v669, %v668
    %v711 = vpack.c.b16 %v671, %v670
    %v712 = vpack.c.b16 %v673, %v672
    %v713 = vpack.c.b16 %v675, %v674
    %v714 = vpack.c.b16 %v677, %v676
    %v715 = vpack.c.b16 %v679, %v678
    %v716 = vpack.c.b16 %v681, %v680
    %v717 = vpack.c.b16 %v683, %v682
    %752 = vst [vmem:[#allocation7] sm:$0xff] %v684
    %753 = vst [vmem:[#allocation7 + $0x8] sm:$0xff] %v685
    %754 = vst [vmem:[#allocation7 + $0x10] sm:$0xff] %v686
    %755 = vst [vmem:[#allocation7 + $0x18] sm:$0xff] %v687
    %756 = vst [vmem:[#allocation7 + $0x20] sm:$0xff] %v688
    %757 = vst [vmem:[#allocation7 + $0x28] sm:$0xff] %v689
    %758 = vst [vmem:[#allocation7 + $0x30] sm:$0xff] %v690
    %759 = vst [vmem:[#allocation7 + $0x38] sm:$0xff] %v691
    %760 = vst [vmem:[#allocation7 + $0x40] sm:$0xff] %v692
    %761 = vst [vmem:[#allocation7 + $0x48] sm:$0xff] %v693
    %762 = vst [vmem:[#allocation7 + $0x50] sm:$0xff] %v694
    %763 = vst [vmem:[#allocation7 + $0x58] sm:$0xff] %v695
    %764 = vst [vmem:[#allocation7 + $0x60] sm:$0xff] %v696
    %765 = vst [vmem:[#allocation7 + $0x68] sm:$0xff] %v697
    %766 = vst [vmem:[#allocation7 + $0x70] sm:$0xff] %v698
    %767 = vst [vmem:[#allocation7 + $0x78] sm:$0xff] %v699
    %768 = vst [vmem:[#allocation7 + $0x80] sm:$0xff] %v700
    %769 = vst [vmem:[#allocation7 + $0x88] sm:$0xff] %v701
    %770 = vst [vmem:[#allocation7 + $0x90] sm:$0xff] %v702
    %771 = vst [vmem:[#allocation7 + $0x98] sm:$0xff] %v703
    %772 = vst [vmem:[#allocation7 + $0xa0] sm:$0xff] %v704
    %773 = vst [vmem:[#allocation7 + $0xa8] sm:$0xff] %v705
    %774 = vst [vmem:[#allocation7 + $0xb0] sm:$0xff] %v706
    %775 = vst [vmem:[#allocation7 + $0xb8] sm:$0xff] %v707
    %776 = vst [vmem:[#allocation7 + $0xc0] sm:$0xff] %v708
    %777 = vst [vmem:[#allocation7 + $0xc8] sm:$0xff] %v709
    %778 = vst [vmem:[#allocation7 + $0xd0] sm:$0xff] %v710
    %779 = vst [vmem:[#allocation7 + $0xd8] sm:$0xff] %v711
    %780 = vst [vmem:[#allocation7 + $0xe0] sm:$0xff] %v712
    %781 = vst [vmem:[#allocation7 + $0xe8] sm:$0xff] %v713
    %782 = vst [vmem:[#allocation7 + $0xf0] sm:$0xff] %v714
    %783 = vst [vmem:[#allocation7 + $0xf8] sm:$0xff] %v715
    %784 = vst [vmem:[#allocation7 + $0x100] sm:$0x33] %v716
    %785 = vst [vmem:[#allocation7 + $0x108] sm:$0x33] %v717
    // Predicated region
    $region18: #{tpu_custom_call.1} parent=1 // pred_check
      _
    $region19: #{tpu_custom_call.1} parent=1 // pred_check_branch
      %787 = sbr.rel (0) target = $region21
    $region20: #{tpu_custom_call.1} parent=1 // pred_region
      %s789 = ssub.s32 4352, 4352
      %790 = vsyncadd [#allocation4], %s789
      %s791 = sshll.u32 [#allocation7], 4
      %s792 = int_to_ptr.vmem [resolvable:$true] %s791
      %797 = dma.vmem_to_hbm [thread:$0]  %s792, 4352, %s2, [#allocation4], 256, 256, 16
    $region21: #{tpu_custom_call.1} parent=1 // pred_fallthru
      _
    // Predicated region
    $region22: #{tpu_custom_call.1} parent=1 // pred_check
      _
    $region23: #{tpu_custom_call.1} parent=1 // pred_check_branch
      %799 = sbr.rel (0) target = $region25
    $region24: #{tpu_custom_call.1} parent=1 // pred_region
      %800 = dma.done [#allocation4], 4352
    $region25: #{tpu_custom_call.1} parent=1 // pred_fallthru
      _
    %801 = vsyncpa [#allocation3], 1
    %802 = vsyncpa [#allocation6], 1
    %803 = vsyncpa [#allocation4], 1

</llo_original>
